<compile_context>
chip_gen: v7x
topology: tpu7x:2x2x1
jax: 0.10.0
libtpu: 0.0.40
codegen_flags: <defaults>
</compile_context>

<pallas_src>
import functools

import jax
import jax.numpy as jnp
from jax.experimental import pallas as pl
from jax.experimental.pallas import tpu as pltpu


def _round_up(x: int, m: int) -> int:
    return ((x + m - 1) // m) * m


def _vmem_capacity_bytes() -> int:
    try:
        cap = int(getattr(pltpu.get_tpu_info(), "vmem_capacity_bytes", 0))
        if cap > 0:
            return cap
    except Exception:
        pass
    return 64 * 1024 * 1024  # conservative fallback = v7x per-TensorCore VMEM


_MAX_WASTE_FRAC = 0.125


def _pick_tile(dim: int, t_max: int, align: int) -> int:
    """Pick a tile (multiple of `align`, <= max(t_max, align)) for `dim`.

    Prefers the largest tile whose padding waste is <= 12.5%; otherwise the
    minimum-waste tile (tie-break: multiples of 256, then larger).
    """
    padded = _round_up(dim, align)
    t_max = max(t_max, align)
    if padded <= t_max:
        return padded
    cands = list(range(align, (t_max // align) * align + 1, align))

    def waste_frac(t):
        tot = _round_up(padded, t)
        return (tot - padded) / tot

    ok = [t for t in cands if waste_frac(t) <= _MAX_WASTE_FRAC]
    if ok:
        return max(ok)
    return min(cands, key=lambda t: (waste_frac(t), t % 256 != 0, -t))


def _vmem_footprint_bytes(tm: int, tn: int, tk: int, itemsize: int = 4) -> int:
    # Double-buffered x / W / bias / out tiles (operands stay f32 in HBM/VMEM;
    # the bf16 cast happens in-register right before the MXU).
    x_buf = 2 * tm * tk
    w_buf = 2 * tk * tn
    b_buf = 2 * 8 * tn            # (1, TN) block occupies a full 8-sublane tile
    o_buf = 2 * tm * tn
    return (x_buf + w_buf + b_buf + o_buf) * itemsize


def lan_kernel(x_ref, w_ref, b_ref, o_ref, *, mxu_dtype):
    k = pl.program_id(2)
    # Cast tiles to bf16 (or keep f32) for the MXU; accumulate in f32.
    part = jnp.dot(
        x_ref[...].astype(mxu_dtype),
        w_ref[...].astype(mxu_dtype),
        preferred_element_type=jnp.float32,
    )

    @pl.when(k == 0)
    def _():
        o_ref[...] = part           # init: first K step writes the partial sum

    @pl.when(k > 0)
    def _():
        o_ref[...] += part          # accumulate into the resident f32 output block

    @pl.when(k == pl.num_programs(2) - 1)
    def _():
        z = o_ref[...] + b_ref[...]            # bias broadcast (1, TN) over rows
        o_ref[...] = jnp.maximum(z, 0.0)       # ReLU; norm is Identity -> no-op


def lan_forward(x, w, b, *, tm=256, tn=1024, tk=1024, mxu_dtype=jnp.bfloat16):
    """Fused Linear + ReLU ("LAN" with Identity norm) as a tiled Pallas TPU GEMM.

    x: (B, in_dim) f32
    w: (in_dim, out_dim) f32   (PyTorch nn.Linear weight, transposed)
    b: (out_dim,) f32
    tm/tn/tk are tile-size *maxima*; actual tiles are chosen per call.
    """
    B, K = x.shape
    Kw, N = w.shape
    assert Kw == K and b.shape == (N,)

    vmem_cap = _vmem_capacity_bytes()
    budget = int(vmem_cap * 0.6)   # per-generation tile budget (v7x: ~38 MiB)

    # Small-batch fast path: a single M tile means W is streamed exactly once;
    # widen TN/TK so it streams in few, lane-dense panels.
    # TODO(synk): consider pipeline_mode=pl.Buffered(3) on the W spec here.
    if _round_up(B, 8) <= tm:
        tn = max(tn, 4096)
        tk = max(tk, 2048)

    TM = _pick_tile(B, tm, 8)
    TN = _pick_tile(N, tn, 128)
    TK = _pick_tile(K, tk, 128)

    # Shrink to the VMEM budget (TK first: only costs extra K steps).
    while _vmem_footprint_bytes(TM, TN, TK) > budget:
        if TK >= TN and TK > 128:
            TK = _round_up(TK // 2, 128)
        elif TN > 128:
            TN = _round_up(TN // 2, 128)
        elif TM > 8:
            TM = _round_up(TM // 2, 8)
        else:
            break

    Mp = _round_up(B, TM)
    Np = _round_up(N, TN)
    Kp = _round_up(K, TK)

    # Pad only when misaligned (padding W / slicing the output are un-hidden
    # HBM round-trips).  Zero padding is matmul-neutral.
    # TODO(synk): in a real module wrapper, pad/transpose the weight once at init.
    xp = x if (Mp == B and Kp == K) else jnp.pad(x, ((0, Mp - B), (0, Kp - K)))
    wp = w if (Kp == K and Np == N) else jnp.pad(w, ((0, Kp - K), (0, Np - N)))
    b2 = b.reshape(1, N)
    bp = b2 if Np == N else jnp.pad(b2, ((0, 0), (0, Np - N)))

    grid = (Mp // TM, Np // TN, Kp // TK)

    footprint = _vmem_footprint_bytes(TM, TN, TK)
    vmem_limit = min(max(footprint + (8 << 20), 32 << 20), int(vmem_cap * 0.8))

    out = pl.pallas_call(
        functools.partial(lan_kernel, mxu_dtype=mxu_dtype),
        out_shape=jax.ShapeDtypeStruct((Mp, Np), jnp.float32),
        grid_spec=pltpu.PrefetchScalarGridSpec(
            num_scalar_prefetch=0,
            grid=grid,
            in_specs=[
                pl.BlockSpec((TM, TK), lambda i, j, k: (i, k)),   # x tile
                pl.BlockSpec((TK, TN), lambda i, j, k: (k, j)),   # W tile
                pl.BlockSpec((1, TN), lambda i, j, k: (0, j)),    # bias row (resident per j)
            ],
            out_specs=pl.BlockSpec((TM, TN), lambda i, j, k: (i, j)),
        ),
        compiler_params=pltpu.CompilerParams(
            # M and N shard across TensorCores (megacore); K is the sequential
            # reduction axis and must stay "arbitrary".
            dimension_semantics=("parallel", "parallel", "arbitrary"),
            vmem_limit_bytes=vmem_limit,
        ),
        cost_estimate=pl.CostEstimate(
            flops=2 * Mp * Kp * Np,
            transcendentals=0,
            bytes_accessed=(Mp * Kp + Kp * Np + Np + Mp * Np) * 4,
        ),
    )(xp, wp, bp)

    if Mp != B or Np != N:
        out = out[:B, :N]
    return out


def lan_reference(x, w, b, operand_dtype=jnp.float32):
    z = jnp.dot(x.astype(operand_dtype), w.astype(operand_dtype),
                preferred_element_type=jnp.float32)
    return jnp.maximum(z + b[None, :], 0.0)


if __name__ == "__main__":
    key = jax.random.PRNGKey(0)
    kx, kw, kb, kx2, kw2, kb2, kx3, kw3, kb3 = jax.random.split(key, 9)

    # --- Check 1: LAN(32, 64) on batch 8, default (bf16-MXU) path ------------
    B, in_dim, out_dim = 8, 32, 64
    bound = in_dim ** -0.5
    x = jax.random.normal(kx, (B, in_dim), dtype=jnp.float32)
    w = jax.random.uniform(kw, (in_dim, out_dim), minval=-bound, maxval=bound,
                           dtype=jnp.float32)
    b = jax.random.uniform(kb, (out_dim,), minval=-bound, maxval=bound,
                           dtype=jnp.float32)
    out = lan_forward(x, w, b)
    jax.block_until_ready(out)
    assert out.shape == (B, out_dim)
    # Tight vs a bf16-operand reference, loose vs the exact f32 reference.
    assert jnp.allclose(out, lan_reference(x, w, b, jnp.bfloat16),
                        atol=2e-3, rtol=2e-3)
    assert jnp.allclose(out, lan_reference(x, w, b), atol=5e-2, rtol=5e-2)

    # --- Check 2: forced tiny tiles + f32 MXU path so the multi-tile grid and
    #     the K-axis init/accumulate/epilogue path are exercised exactly. -----
    B2, in2, out2 = 16, 384, 256
    bound2 = in2 ** -0.5
    x2 = jax.random.normal(kx2, (B2, in2), dtype=jnp.float32)
    w2 = jax.random.uniform(kw2, (in2, out2), minval=-bound2, maxval=bound2,
                            dtype=jnp.float32)
    b2 = jax.random.uniform(kb2, (out2,), minval=-bound2, maxval=bound2,
                            dtype=jnp.float32)
    out2_ = lan_forward(x2, w2, b2, tm=8, tn=128, tk=128,
                        mxu_dtype=jnp.float32)
    jax.block_until_ready(out2_)
    assert out2_.shape == (B2, out2)
    assert jnp.allclose(out2_, lan_reference(x2, w2, b2), atol=1e-4, rtol=1e-4)

    # --- Check 3: misaligned dims + small-batch fast path, default config ----
    B3, in3, out3 = 12, 200, 300
    bound3 = in3 ** -0.5
    x3 = jax.random.normal(kx3, (B3, in3), dtype=jnp.float32)
    w3 = jax.random.uniform(kw3, (in3, out3), minval=-bound3, maxval=bound3,
                            dtype=jnp.float32)
    b3 = jax.random.uniform(kb3, (out3,), minval=-bound3, maxval=bound3,
                            dtype=jnp.float32)
    out3_ = lan_forward(x3, w3, b3)
    jax.block_until_ready(out3_)
    assert out3_.shape == (B3, out3)
    assert jnp.allclose(out3_, lan_reference(x3, w3, b3, jnp.bfloat16),
                        atol=2e-3, rtol=2e-3)
    assert jnp.allclose(out3_, lan_reference(x3, w3, b3), atol=5e-2, rtol=5e-2)

    print("KERNEL_OK")
</pallas_src>

<mosaic_0001>
module attributes {stable_mosaic.version = 11 : i64} {
  func.func @lan_kernel(%arg0: i32, %arg1: i32, %arg2: i32, %arg3: memref<8x128xf32, #tpu.memory_space<vmem>>, %arg4: memref<128x128xf32, #tpu.memory_space<vmem>>, %arg5: memref<1x128xf32, #tpu.memory_space<vmem>>, %arg6: memref<8x128xf32, #tpu.memory_space<vmem>>) attributes {dimension_semantics = [#tpu.dimension_semantics<parallel>, #tpu.dimension_semantics<parallel>, #tpu.dimension_semantics<arbitrary>], iteration_bounds = array<i64: 1, 1, 1>, scalar_prefetch = 0 : i64, scratch_operands = 0 : i64, tpu.core_type = #tpu.core_type<tc>, window_params = [{transform_indices = @transform_0, window_bounds = array<i64: 8, 128>}, {transform_indices = @transform_1, window_bounds = array<i64: 128, 128>}, {transform_indices = @transform_2, window_bounds = array<i64: 1, 128>}, {transform_indices = @transform_3, window_bounds = array<i64: 8, 128>}]} {
    %c0 = arith.constant 0 : index
    %c0_0 = arith.constant 0 : index
    %0 = vector.load %arg3[%c0, %c0_0] : memref<8x128xf32, #tpu.memory_space<vmem>>, vector<8x128xf32>
    %1 = arith.truncf %0 : vector<8x128xf32> to vector<8x128xbf16>
    %c0_1 = arith.constant 0 : index
    %c0_2 = arith.constant 0 : index
    %2 = vector.load %arg4[%c0_1, %c0_2] : memref<128x128xf32, #tpu.memory_space<vmem>>, vector<128x128xf32>
    %3 = arith.truncf %2 : vector<128x128xf32> to vector<128x128xbf16>
    %cst = arith.constant dense<0.000000e+00> : vector<8x128xf32>
    %4 = tpu.matmul %1, %3, %cst {dimension_numbers = #tpu.dot_dimension_numbers<[1], [0], [0], [1], [0, 0, 1, 1], [], []>} : vector<8x128xbf16>, vector<128x128xbf16>, vector<8x128xf32> -> vector<8x128xf32>
    %c0_i32 = arith.constant 0 : i32
    %5 = arith.cmpi eq, %arg2, %c0_i32 : i32
    %6 = arith.extui %5 : i1 to i32
    %c0_i32_3 = arith.constant 0 : i32
    %7 = arith.cmpi ne, %6, %c0_i32_3 : i32
    scf.if %7 {
      %c0_8 = arith.constant 0 : index
      %c0_9 = arith.constant 0 : index
      %14 = vector.load %arg6[%c0_8, %c0_9] : memref<8x128xf32, #tpu.memory_space<vmem>>, vector<8x128xf32>
      tpu.vector_store %arg6[%c0_8, %c0_9], %4 {strides = array<i32>} : memref<8x128xf32, #tpu.memory_space<vmem>>, vector<8x128xf32>,
    } else {
    }
    %c0_i32_4 = arith.constant 0 : i32
    %8 = arith.cmpi sgt, %arg2, %c0_i32_4 : i32
    %9 = arith.extui %8 : i1 to i32
    %c0_i32_5 = arith.constant 0 : i32
    %10 = arith.cmpi ne, %9, %c0_i32_5 : i32
    scf.if %10 {
      %c0_8 = arith.constant 0 : index
      %c0_9 = arith.constant 0 : index
      %14 = vector.load %arg6[%c0_8, %c0_9] : memref<8x128xf32, #tpu.memory_space<vmem>>, vector<8x128xf32>
      %15 = arith.addf %14, %4 : vector<8x128xf32>
      %c0_10 = arith.constant 0 : index
      %c0_11 = arith.constant 0 : index
      %16 = vector.load %arg6[%c0_10, %c0_11] : memref<8x128xf32, #tpu.memory_space<vmem>>, vector<8x128xf32>
      tpu.vector_store %arg6[%c0_10, %c0_11], %15 {strides = array<i32>} : memref<8x128xf32, #tpu.memory_space<vmem>>, vector<8x128xf32>,
    } else {
    }
    %c0_i32_6 = arith.constant 0 : i32
    %11 = arith.cmpi eq, %arg2, %c0_i32_6 : i32
    %12 = arith.extui %11 : i1 to i32
    %c0_i32_7 = arith.constant 0 : i32
    %13 = arith.cmpi ne, %12, %c0_i32_7 : i32
    scf.if %13 {
      %c0_8 = arith.constant 0 : index
      %c0_9 = arith.constant 0 : index
      %14 = vector.load %arg6[%c0_8, %c0_9] : memref<8x128xf32, #tpu.memory_space<vmem>>, vector<8x128xf32>
      %c0_10 = arith.constant 0 : index
      %c0_11 = arith.constant 0 : index
      %15 = vector.load %arg5[%c0_10, %c0_11] : memref<1x128xf32, #tpu.memory_space<vmem>>, vector<1x128xf32>
      %16 = vector.broadcast %15 : vector<1x128xf32> to vector<8x128xf32>
      %17 = arith.addf %14, %16 : vector<8x128xf32>
      %cst_12 = arith.constant 0.000000e+00 : f32
      %18 = vector.broadcast %cst_12 : f32 to vector<8x128xf32>
      %19 = arith.maximumf %17, %18 : vector<8x128xf32>
      %c0_13 = arith.constant 0 : index
      %c0_14 = arith.constant 0 : index
      %20 = vector.load %arg6[%c0_13, %c0_14] : memref<8x128xf32, #tpu.memory_space<vmem>>, vector<8x128xf32>
      tpu.vector_store %arg6[%c0_13, %c0_14], %19 {strides = array<i32>} : memref<8x128xf32, #tpu.memory_space<vmem>>, vector<8x128xf32>,
    } else {
    }
    return
  }
  func.func @transform_0(%arg0: i32, %arg1: i32, %arg2: i32) -> (i32, i32) {
    %c0_i32 = arith.constant 0 : i32
    return %arg0, %arg2 : i32, i32
  }
  func.func @transform_1(%arg0: i32, %arg1: i32, %arg2: i32) -> (i32, i32) {
    %c0_i32 = arith.constant 0 : i32
    return %arg2, %arg1 : i32, i32
  }
  func.func @transform_2(%arg0: i32, %arg1: i32, %arg2: i32) -> (i32, i32) {
    %c0_i32 = arith.constant 0 : i32
    %c0_i32_0 = arith.constant 0 : i32
    return %c0_i32, %arg1 : i32, i32
  }
  func.func @transform_3(%arg0: i32, %arg1: i32, %arg2: i32) -> (i32, i32) {
    %c0_i32 = arith.constant 0 : i32
    return %arg0, %arg1 : i32, i32
  }
}

</mosaic_0001>

<llo_original>
// kernel: tpu_custom_call.1
$region0: #{tpu_custom_call.1}
  #allocation0 [shape = 'u32[]', space=smem, size = 0x4, offset = 0x4, fixed_abs, tag = 'smem constant byte address 0x4 - core index']
  #allocation1 [shape = 'u32[144,128]{1,0:T(1,128)}', space=vmem, size = 0x12000, scoped, tag = 'internal scratch']
  %s0 = inlined_call_operand.hbm [shape: f32[8,128], index: 0, kind: input, shape index: {}]
  %s1 = inlined_call_operand.hbm [shape: f32[128,128], index: 1, kind: input, shape index: {}]
  %s2 = inlined_call_operand.vmem [shape: f32[1,128], index: 2, kind: input, shape index: {}]
  %s3 = inlined_call_operand.hbm [shape: f32[8,128], index: 3, kind: output, shape index: {}]
  %s4 = sld [smem:[#allocation0]]
  $region42: #{tpu_custom_call.1} parent=0
    _
  %s6 = ssub.s32 1, %s4
  %s7 = scalar_select 0, %s6, %s4
  $region1: #{tpu_custom_call.1} parent=0
    #allocation2 [shape = 'u8[4096]{0}', space=vmem, size = 0x1000, scoped, tag = 'input window, operand 0, single buffered']
    #allocation3 [shape = 's32[1]{0}', space=sflag, size = 0x4, scoped, tag = 'scoped memory for tpu_custom_call.1']
    #allocation4 [shape = 's32[1]{0}', space=sflag, size = 0x4, scoped, tag = 'scoped memory for tpu_custom_call.1']
    #allocation5 [shape = 'u8[65536]{0}', space=vmem, size = 0x10000, scoped, tag = 'input window, operand 1, single buffered']
    #allocation6 [shape = 's32[1]{0}', space=sflag, size = 0x4, scoped, tag = 'scoped memory for tpu_custom_call.1']
    #allocation7 [shape = 'u8[4096]{0}', space=vmem, size = 0x1000, scoped, tag = 'output window, operand 0, single buffered']
    %8 = vsyncpa [#allocation3], 0
    %9 = vsyncpa [#allocation6], 0
    %10 = vsyncpa [#allocation4], 0
    // Predicated region
    $region2: #{tpu_custom_call.1} parent=1 // pred_check
      _
    $region3: #{tpu_custom_call.1} parent=1 // pred_check_branch
      %12 = sbr.rel (0) target = $region5
    $region4: #{tpu_custom_call.1} parent=1 // pred_region
      %s14 = ssub.s32 128, 128
      %15 = vsyncadd [#allocation3], %s14
      %s17 = sshll.u32 [#allocation2], 4
      %s18 = int_to_ptr.vmem [resolvable:$true] %s17
      %20 = dma.hbm_to_vmem [thread:$0]  %s0, 128, %s18, [#allocation3]
    $region5: #{tpu_custom_call.1} parent=1 // pred_fallthru
      _
    // Predicated region
    $region6: #{tpu_custom_call.1} parent=1 // pred_check
      _
    $region7: #{tpu_custom_call.1} parent=1 // pred_check_branch
      %22 = sbr.rel (0) target = $region9
    $region8: #{tpu_custom_call.1} parent=1 // pred_region
      %s24 = ssub.s32 2048, 2048
      %25 = vsyncadd [#allocation6], %s24
      %s26 = sshll.u32 [#allocation5], 4
      %s27 = int_to_ptr.vmem [resolvable:$true] %s26
      %32 = dma.hbm_to_vmem [thread:$0]  %s1, 2048, %s27, [#allocation6], 128, 128, 8
    $region9: #{tpu_custom_call.1} parent=1 // pred_fallthru
      _
    // Predicated region
    $region10: #{tpu_custom_call.1} parent=1 // pred_check
      _
    $region11: #{tpu_custom_call.1} parent=1 // pred_check_branch
      %34 = sbr.rel (0) target = $region13
    $region12: #{tpu_custom_call.1} parent=1 // pred_region
      _
    $region13: #{tpu_custom_call.1} parent=1 // pred_fallthru
      _
    // Predicated region
    $region14: #{tpu_custom_call.1} parent=1 // pred_check
      _
    $region15: #{tpu_custom_call.1} parent=1 // pred_check_branch
      %36 = sbr.rel (0) target = $region17
    $region16: #{tpu_custom_call.1} parent=1 // pred_region
      %37 = dma.done [#allocation3], 128
    $region17: #{tpu_custom_call.1} parent=1 // pred_fallthru
      _
    // Predicated region
    $region18: #{tpu_custom_call.1} parent=1 // pred_check
      _
    $region19: #{tpu_custom_call.1} parent=1 // pred_check_branch
      %39 = sbr.rel (0) target = $region21
    $region20: #{tpu_custom_call.1} parent=1 // pred_region
      %40 = dma.done [#allocation6], 2048
    $region21: #{tpu_custom_call.1} parent=1 // pred_fallthru
      _
    %v42 = vld [vmem:[#allocation2] sm:$0xff]
    %v43 = vpack.c.bf16 %v42, %v42
    %v44 = vld [vmem:[#allocation5] sm:$0xff]
    %v45 = vld [vmem:[#allocation5 + $0x8] sm:$0xff]
    %v46 = vld [vmem:[#allocation5 + $0x10] sm:$0xff]
    %v47 = vld [vmem:[#allocation5 + $0x18] sm:$0xff]
    %v48 = vld [vmem:[#allocation5 + $0x20] sm:$0xff]
    %v49 = vld [vmem:[#allocation5 + $0x28] sm:$0xff]
    %v50 = vld [vmem:[#allocation5 + $0x30] sm:$0xff]
    %v51 = vld [vmem:[#allocation5 + $0x38] sm:$0xff]
    %v52 = vld [vmem:[#allocation5 + $0x40] sm:$0xff]
    %v53 = vld [vmem:[#allocation5 + $0x48] sm:$0xff]
    %v54 = vld [vmem:[#allocation5 + $0x50] sm:$0xff]
    %v55 = vld [vmem:[#allocation5 + $0x58] sm:$0xff]
    %v56 = vld [vmem:[#allocation5 + $0x60] sm:$0xff]
    %v57 = vld [vmem:[#allocation5 + $0x68] sm:$0xff]
    %v58 = vld [vmem:[#allocation5 + $0x70] sm:$0xff]
    %v59 = vld [vmem:[#allocation5 + $0x78] sm:$0xff]
    %v60 = vpack.c.bf16 %v45, %v44
    %v61 = vpack.c.bf16 %v47, %v46
    %v62 = vpack.c.bf16 %v49, %v48
    %v63 = vpack.c.bf16 %v51, %v50
    %v64 = vpack.c.bf16 %v53, %v52
    %v65 = vpack.c.bf16 %v55, %v54
    %v66 = vpack.c.bf16 %v57, %v56
    %v67 = vpack.c.bf16 %v59, %v58
    %68 = vmatprep.subr.bf16.mxu0 0
    %69 = vmatpush1.bf16.msra.mxu0 %v60
    %70 = vmatprep.subr.bf16.mxu0 0
    %71 = vmatpush1.bf16.msra.mxu0 %v61
    %72 = vmatprep.subr.bf16.mxu0 0
    %73 = vmatpush1.bf16.msra.mxu0 %v62
    %74 = vmatprep.subr.bf16.mxu0 0
    %75 = vmatpush1.bf16.msra.mxu0 %v63
    %76 = vmatprep.subr.bf16.mxu0 0
    %77 = vmatpush1.bf16.msra.mxu0 %v64
    %78 = vmatprep.subr.bf16.mxu0 0
    %79 = vmatpush1.bf16.msra.mxu0 %v65
    %80 = vmatprep.subr.bf16.mxu0 0
    %81 = vmatpush1.bf16.msra.mxu0 %v66
    %82 = vmatprep.subr.bf16.mxu0 0
    %83 = vmatpush1.bf16.msra.mxu0 %v67
    %84 = vmatprep.subr.bf16.mxu0 0
    %85 = vmatpush1.bf16.msra.mxu0 0
    %86 = vmatprep.subr.bf16.mxu0 0
    %87 = vmatpush1.bf16.msra.mxu0 0
    %88 = vmatprep.subr.bf16.mxu0 0
    %89 = vmatpush1.bf16.msra.mxu0 0
    %90 = vmatprep.subr.bf16.mxu0 0
    %91 = vmatpush1.bf16.msra.mxu0 0
    %92 = vmatprep.subr.bf16.mxu0 0
    %93 = vmatpush1.bf16.msra.mxu0 0
    %94 = vmatprep.subr.bf16.mxu0 0
    %95 = vmatpush1.bf16.msra.mxu0 0
    %96 = vmatprep.subr.bf16.mxu0 0
    %97 = vmatpush1.bf16.msra.mxu0 0
    %98 = vmatprep.subr.bf16.mxu0 0
    %99 = vmatpush1.bf16.msra.mxu0 0
    %100 = vmatprep.mubr.bf16.mxu0 0
    %101 = vmatmul.mubr.bf16.gmra.mrb[0].mxu0 %v43
    %v102 = vpop.f32.mrb[0].mxu0
    %v103 = vadd.f32 0.0, %v102
    %v104 = vpop.f32.mrb[0].mxu0
    %v105 = vpop.f32.mrb[0].mxu0
    %v106 = vpop.f32.mrb[0].mxu0
    %107 = vdwg.mxu0
    %p108 = scmp.eq.s32.totalorder 0, 0
    // Predicated region
    $region22: #{tpu_custom_call.1} parent=1 // pred_check
      %p109 = pneg %p108
    $region23: #{tpu_custom_call.1} parent=1 // pred_check_branch
      %111 = sbr.rel (%p109) target = $region25
    $region24: #{tpu_custom_call.1} parent=1 // pred_region
      %112 = vst [vmem:[#allocation7] sm:$0xff] %v103
    $region25: #{tpu_custom_call.1} parent=1 // pred_fallthru
      _
    %p113 = scmp.gt.s32.totalorder 0, 0
    // Predicated region
    $region26: #{tpu_custom_call.1} parent=1 // pred_check
      %p114 = pneg %p113
    $region27: #{tpu_custom_call.1} parent=1 // pred_check_branch
      %116 = sbr.rel (%p114) target = $region29
    $region28: #{tpu_custom_call.1} parent=1 // pred_region
      %v117 = vld [vmem:[#allocation7] sm:$0xff]
      %v118 = vadd.f32 %v117, %v103
      %119 = vst [vmem:[#allocation7] sm:$0xff] %v118
    $region29: #{tpu_custom_call.1} parent=1 // pred_fallthru
      _
    // Predicated region
    $region30: #{tpu_custom_call.1} parent=1 // pred_check
      %p120 = pneg %p108
    $region31: #{tpu_custom_call.1} parent=1 // pred_check_branch
      %122 = sbr.rel (%p120) target = $region33
    $region32: #{tpu_custom_call.1} parent=1 // pred_region
      %v123 = vld [vmem:[#allocation7] sm:$0xff]
      %v124 = vld [vmem:[%s2] sm:$0x1]
      %v126 = vlaneseq
      %v127 = vshrl.u32 %v126, 7
      %v128 = vsub.s32 0, %v127
      %v129 = vrot.slane %v124, %v128
      %v131 = vadd.f32 %v123, %v129
      %v132 = vmax.f32 %v131, 0.0
      %133 = vst [vmem:[#allocation7] sm:$0xff] %v132
    $region33: #{tpu_custom_call.1} parent=1 // pred_fallthru
      _
    // Predicated region
    $region34: #{tpu_custom_call.1} parent=1 // pred_check
      _
    $region35: #{tpu_custom_call.1} parent=1 // pred_check_branch
      %135 = sbr.rel (0) target = $region37
    $region36: #{tpu_custom_call.1} parent=1 // pred_region
      %s137 = ssub.s32 128, 128
      %138 = vsyncadd [#allocation4], %s137
      %s140 = sshll.u32 [#allocation7], 4
      %s141 = int_to_ptr.vmem [resolvable:$true] %s140
      %143 = dma.vmem_to_hbm [thread:$0]  %s141, 128, %s3, [#allocation4]
    $region37: #{tpu_custom_call.1} parent=1 // pred_fallthru
      _
    // Predicated region
    $region38: #{tpu_custom_call.1} parent=1 // pred_check
      _
    $region39: #{tpu_custom_call.1} parent=1 // pred_check_branch
      %145 = sbr.rel (0) target = $region41
    $region40: #{tpu_custom_call.1} parent=1 // pred_region
      %146 = dma.done [#allocation4], 128
    $region41: #{tpu_custom_call.1} parent=1 // pred_fallthru
      _
    %147 = vsyncpa [#allocation3], 1
    %148 = vsyncpa [#allocation6], 1
    %149 = vsyncpa [#allocation4], 1

</llo_original>
